<compile_context>
chip_gen: v5e
topology: v5e:2x2
jax: 0.10.0
libtpu: 0.0.40
codegen_flags: <defaults>
</compile_context>

<pallas_src>
import functools

import jax
import jax.numpy as jnp
from jax.experimental import pallas as pl
from jax.experimental.pallas import tpu as pltpu


def _bahdanau_kernel(x_ref, wk_ref, bk_ref, wq_ref, wc_ref, o_ref, *, tanh_dtype):
    # x_ref:  (BB, T, H)   batch block
    # wk_ref: (H, H)  = Wk^T   (resident across grid steps)
    # bk_ref: (1, H)  key bias
    # wq_ref: (H, H)  = Wq^T   (resident)
    # wc_ref: (1, H)  context weight
    # o_ref:  (BB, H)
    BB, T, H = x_ref.shape
    x = x_ref[...]                                             # (BB, T, H) f32

    # --- key projection: one (BB*T, H) @ (H, H) MXU matmul --------------------
    x2 = x.reshape(BB * T, H)
    k = jnp.dot(x2, wk_ref[...], preferred_element_type=jnp.float32)
    k = (k + bk_ref[...]).reshape(BB, T, H)                    # key(x)

    # --- query of the temporal mean: mean first, then a (BB, H) @ (H, H) matmul
    xm = jnp.mean(x, axis=1)                                   # (BB, H)
    q = jnp.dot(xm, wq_ref[...], preferred_element_type=jnp.float32)   # (BB, H)

    # --- scores over T, kept lane-dense as (BB, T) -----------------------------
    # tanh_dtype=bfloat16 roughly doubles EUP tanh throughput on v6e/v7x; keep f32 on v5e.
    z = (k + q[:, None, :]).astype(tanh_dtype)
    t = jnp.tanh(z).astype(jnp.float32)                        # (BB, T, H)
    s = jnp.sum(t * wc_ref[...], axis=2)                       # (BB, T)

    # --- numerically-stable softmax over T (per-row lane reductions, exact divide)
    m = jnp.max(s, axis=1, keepdims=True)                      # (BB, 1)
    e = jnp.exp(s - m)                                         # (BB, T)
    a = e / jnp.sum(e, axis=1, keepdims=True)                  # (BB, T)

    # --- weighted sum over T on the VPU (+ sublane reduce) ---------------------
    o = jnp.sum(a[:, :, None] * x, axis=1)                     # (BB, H)
    o_ref[...] = o.astype(o_ref.dtype)


def bahdanau_attention(x, w_key, b_key, w_query, w_context, *,
                       block_b=1024, tanh_dtype=jnp.float32):
    """x: (B, T, H) float32.  Weights in PyTorch Linear layout:
    w_key (H, H), b_key (H,), w_query (H, H), w_context (1, H)."""
    B, T, H = x.shape

    # --- batch-block selection -------------------------------------------------
    # x blocks are contiguous bb*T*H*4-byte slabs; target multi-MiB blocks, capped at B.
    # Keep bb a multiple of 8 (sublane-aligned output tiles -> unmasked stores) and keep
    # the grid >= 2 steps when B allows so ("parallel",) shards across v7x's 2 TensorCores.
    bb = max(1, min(block_b, B))
    if bb < B:
        bb = max(8, (bb // 8) * 8)
    n_blocks = (B + bb - 1) // bb
    if n_blocks == 1 and B > 8:
        half = (B + 1) // 2
        bb = ((half + 7) // 8) * 8
        n_blocks = (B + bb - 1) // bb
    Bp = n_blocks * bb
    if Bp != B:
        # Zero-padded batch rows are harmless: finite scores, zero output, sliced off below.
        x = jnp.pad(x, ((0, Bp - B), (0, 0), (0, 0)))

    # Weights pre-transposed so the kernel computes x @ W^T as plain row-major matmuls.
    wk = w_key.T                                   # (H, H)
    wq = w_query.T                                 # (H, H)
    bk = b_key.reshape(1, H)
    wc = w_context.reshape(1, H)

    # VMEM budget: double-buffered x / out blocks + resident weights + compiler scratch
    # for the in-kernel intermediates; capped <= 32 MiB (v7x has 64 MiB per TC).
    x_blk = bb * T * H * x.dtype.itemsize
    o_blk = bb * H * 4
    w_bytes = (2 * H * H + 2 * H) * 4
    vmem_limit = int(min(max(4 * x_blk + 2 * o_blk + w_bytes + (4 << 20), 16 << 20),
                         32 << 20))

    kernel = functools.partial(_bahdanau_kernel, tanh_dtype=tanh_dtype)

    out = pl.pallas_call(
        kernel,
        out_shape=jax.ShapeDtypeStruct((Bp, H), jnp.float32),
        grid_spec=pltpu.PrefetchScalarGridSpec(
            num_scalar_prefetch=0,
            grid=(n_blocks,),
            in_specs=[
                pl.BlockSpec((bb, T, H), lambda i: (i, 0, 0)),   # x batch-block
                pl.BlockSpec((H, H), lambda i: (0, 0)),          # Wk^T (resident)
                pl.BlockSpec((1, H), lambda i: (0, 0)),          # key bias
                pl.BlockSpec((H, H), lambda i: (0, 0)),          # Wq^T (resident)
                pl.BlockSpec((1, H), lambda i: (0, 0)),          # context weight
            ],
            out_specs=pl.BlockSpec((bb, H), lambda i: (i, 0)),
        ),
        compiler_params=pltpu.CompilerParams(
            dimension_semantics=("parallel",),     # megacore-shardable on v7x
            vmem_limit_bytes=vmem_limit,
        ),
    )(x, wk, bk, wq, wc)

    return out[:B] if Bp != B else out


def bahdanau_attention_ref(x, w_key, b_key, w_query, w_context):
    """Pure-JAX reference mirroring the PyTorch forward (highest matmul precision)."""
    hp = jax.lax.Precision.HIGHEST
    k = jnp.einsum("bth,oh->bto", x, w_key, precision=hp) + b_key                        # (B,T,H)
    q = jnp.einsum("bth,oh->bto", x.mean(axis=1, keepdims=True), w_query, precision=hp)  # (B,1,H)
    s = jnp.einsum("bth,oh->bto", jnp.tanh(k + q), w_context, precision=hp)[..., 0]      # (B,T)
    a = jax.nn.softmax(s, axis=1)
    return jnp.sum(a[:, :, None] * x, axis=1)                                            # (B,H)


if __name__ == "__main__":
    B, T, H = 16, 8, 32          # blocked 8 batch rows per grid step -> grid=(2,)
    key = jax.random.PRNGKey(0)
    kx, k1, k2, k3, k4 = jax.random.split(key, 5)

    x = jax.random.normal(kx, (B, T, H), dtype=jnp.float32)

    # PyTorch Linear default init: U(-1/sqrt(fan_in), 1/sqrt(fan_in))
    bound = float(H) ** -0.5
    w_key = jax.random.uniform(k1, (H, H), jnp.float32, -bound, bound)
    b_key = jax.random.uniform(k2, (H,), jnp.float32, -bound, bound)
    w_query = jax.random.uniform(k3, (H, H), jnp.float32, -bound, bound)
    w_context = jax.random.uniform(k4, (1, H), jnp.float32, -bound, bound)

    out = bahdanau_attention(x, w_key, b_key, w_query, w_context)
    out = jax.block_until_ready(out)

    ref = bahdanau_attention_ref(x, w_key, b_key, w_query, w_context)
    assert out.shape == (B, H)
    # Tolerance covers possible f32-matmul pass-count differences between the Mosaic
    # MXU path and the XLA reference across TPU generations.
    max_err = float(jnp.max(jnp.abs(out - ref)))
    assert jnp.allclose(out, ref, atol=5e-3, rtol=5e-3), (
        f"Pallas kernel mismatch vs reference (max abs err {max_err:.3e})")

    print("KERNEL_OK")
</pallas_src>

<mosaic_0001>
module attributes {stable_mosaic.version = 11 : i64} {
  func.func @_bahdanau_kernel(%arg0: i32, %arg1: memref<8x8x32xf32, #tpu.memory_space<vmem>>, %arg2: memref<32x32xf32, #tpu.memory_space<vmem>>, %arg3: memref<1x32xf32, #tpu.memory_space<vmem>>, %arg4: memref<32x32xf32, #tpu.memory_space<vmem>>, %arg5: memref<1x32xf32, #tpu.memory_space<vmem>>, %arg6: memref<8x32xf32, #tpu.memory_space<vmem>>) attributes {dimension_semantics = [#tpu.dimension_semantics<parallel>], iteration_bounds = array<i64: 2>, scalar_prefetch = 0 : i64, scratch_operands = 0 : i64, tpu.core_type = #tpu.core_type<tc>, window_params = [{transform_indices = @transform_0, window_bounds = array<i64: 8, 8, 32>}, {pipeline_mode = #tpu.pipeline_mode<synchronous>, transform_indices = @transform_1, window_bounds = array<i64: 32, 32>}, {pipeline_mode = #tpu.pipeline_mode<synchronous>, transform_indices = @transform_2, window_bounds = array<i64: 1, 32>}, {pipeline_mode = #tpu.pipeline_mode<synchronous>, transform_indices = @transform_3, window_bounds = array<i64: 32, 32>}, {pipeline_mode = #tpu.pipeline_mode<synchronous>, transform_indices = @transform_4, window_bounds = array<i64: 1, 32>}, {transform_indices = @transform_5, window_bounds = array<i64: 8, 32>}]} {
    %c0 = arith.constant 0 : index
    %c0_0 = arith.constant 0 : index
    %c0_1 = arith.constant 0 : index
    %0 = vector.load %arg1[%c0, %c0_0, %c0_1] : memref<8x8x32xf32, #tpu.memory_space<vmem>>, vector<8x8x32xf32>
    %1 = vector.shape_cast %0 : vector<8x8x32xf32> to vector<64x32xf32>
    %c0_2 = arith.constant 0 : index
    %c0_3 = arith.constant 0 : index
    %2 = vector.load %arg2[%c0_2, %c0_3] : memref<32x32xf32, #tpu.memory_space<vmem>>, vector<32x32xf32>
    %cst = arith.constant dense<0.000000e+00> : vector<64x32xf32>
    %3 = tpu.matmul %1, %2, %cst {dimension_numbers = #tpu.dot_dimension_numbers<[1], [0], [0], [1], [0, 0, 1, 1], [], []>} : vector<64x32xf32>, vector<32x32xf32>, vector<64x32xf32> -> vector<64x32xf32>
    %c0_4 = arith.constant 0 : index
    %c0_5 = arith.constant 0 : index
    %4 = vector.load %arg3[%c0_4, %c0_5] : memref<1x32xf32, #tpu.memory_space<vmem>>, vector<1x32xf32>
    %5 = vector.broadcast %4 : vector<1x32xf32> to vector<64x32xf32>
    %6 = arith.addf %3, %5 : vector<64x32xf32>
    %7 = vector.shape_cast %6 : vector<64x32xf32> to vector<8x8x32xf32>
    %cst_6 = arith.constant dense<0.000000e+00> : vector<8x32xf32>
    %8 = vector.multi_reduction <add>, %0, %cst_6 [1] : vector<8x8x32xf32> to vector<8x32xf32>
    %cst_7 = arith.constant 8.000000e+00 : f32
    %9 = vector.broadcast %cst_7 : f32 to vector<8x32xf32>
    %10 = arith.divf %8, %9 : vector<8x32xf32>
    %c0_8 = arith.constant 0 : index
    %c0_9 = arith.constant 0 : index
    %11 = vector.load %arg4[%c0_8, %c0_9] : memref<32x32xf32, #tpu.memory_space<vmem>>, vector<32x32xf32>
    %cst_10 = arith.constant dense<0.000000e+00> : vector<8x32xf32>
    %12 = tpu.matmul %10, %11, %cst_10 {dimension_numbers = #tpu.dot_dimension_numbers<[1], [0], [0], [1], [0, 0, 1, 1], [], []>} : vector<8x32xf32>, vector<32x32xf32>, vector<8x32xf32> -> vector<8x32xf32>
    %13 = vector.shape_cast %12 : vector<8x32xf32> to vector<8x1x32xf32>
    %14 = vector.broadcast %13 : vector<8x1x32xf32> to vector<8x8x32xf32>
    %15 = arith.addf %7, %14 : vector<8x8x32xf32>
    %16 = math.tanh %15 : vector<8x8x32xf32>
    %c0_11 = arith.constant 0 : index
    %c0_12 = arith.constant 0 : index
    %17 = vector.load %arg5[%c0_11, %c0_12] : memref<1x32xf32, #tpu.memory_space<vmem>>, vector<1x32xf32>
    %18 = vector.shape_cast %17 : vector<1x32xf32> to vector<1x1x32xf32>
    %19 = vector.broadcast %18 : vector<1x1x32xf32> to vector<8x8x32xf32>
    %20 = arith.mulf %16, %19 : vector<8x8x32xf32>
    %cst_13 = arith.constant dense<0.000000e+00> : vector<8x8xf32>
    %21 = vector.multi_reduction <add>, %20, %cst_13 [2] : vector<8x8x32xf32> to vector<8x8xf32>
    %cst_14 = arith.constant dense<0xFF800000> : vector<8xf32>
    %22 = vector.multi_reduction <maximumf>, %21, %cst_14 [1] : vector<8x8xf32> to vector<8xf32>
    %23 = vector.shape_cast %22 : vector<8xf32> to vector<8x1xf32>
    %24 = vector.broadcast %23 : vector<8x1xf32> to vector<8x8xf32>
    %25 = arith.subf %21, %24 : vector<8x8xf32>
    %26 = math.exp %25 : vector<8x8xf32>
    %cst_15 = arith.constant dense<0.000000e+00> : vector<8xf32>
    %27 = vector.multi_reduction <add>, %26, %cst_15 [1] : vector<8x8xf32> to vector<8xf32>
    %28 = vector.shape_cast %27 : vector<8xf32> to vector<8x1xf32>
    %29 = vector.broadcast %28 : vector<8x1xf32> to vector<8x8xf32>
    %30 = arith.divf %26, %29 : vector<8x8xf32>
    %31 = vector.shape_cast %30 : vector<8x8xf32> to vector<8x8x1xf32>
    %32 = vector.broadcast %31 : vector<8x8x1xf32> to vector<8x8x32xf32>
    %33 = arith.mulf %32, %0 : vector<8x8x32xf32>
    %cst_16 = arith.constant dense<0.000000e+00> : vector<8x32xf32>
    %34 = vector.multi_reduction <add>, %33, %cst_16 [1] : vector<8x8x32xf32> to vector<8x32xf32>
    %c0_17 = arith.constant 0 : index
    %c0_18 = arith.constant 0 : index
    %35 = vector.load %arg6[%c0_17, %c0_18] : memref<8x32xf32, #tpu.memory_space<vmem>>, vector<8x32xf32>
    tpu.vector_store %arg6[%c0_17, %c0_18], %34 {strides = array<i32>} : memref<8x32xf32, #tpu.memory_space<vmem>>, vector<8x32xf32>,
    return
  }
  func.func @transform_0(%arg0: i32) -> (i32, i32, i32) {
    %c0_i32 = arith.constant 0 : i32
    %c0_i32_0 = arith.constant 0 : i32
    %c0_i32_1 = arith.constant 0 : i32
    return %arg0, %c0_i32, %c0_i32_0 : i32, i32, i32
  }
  func.func @transform_1(%arg0: i32) -> (i32, i32) {
    %c0_i32 = arith.constant 0 : i32
    %c0_i32_0 = arith.constant 0 : i32
    %c0_i32_1 = arith.constant 0 : i32
    return %c0_i32, %c0_i32_0 : i32, i32
  }
  func.func @transform_2(%arg0: i32) -> (i32, i32) {
    %c0_i32 = arith.constant 0 : i32
    %c0_i32_0 = arith.constant 0 : i32
    %c0_i32_1 = arith.constant 0 : i32
    return %c0_i32, %c0_i32_0 : i32, i32
  }
  func.func @transform_3(%arg0: i32) -> (i32, i32) {
    %c0_i32 = arith.constant 0 : i32
    %c0_i32_0 = arith.constant 0 : i32
    %c0_i32_1 = arith.constant 0 : i32
    return %c0_i32, %c0_i32_0 : i32, i32
  }
  func.func @transform_4(%arg0: i32) -> (i32, i32) {
    %c0_i32 = arith.constant 0 : i32
    %c0_i32_0 = arith.constant 0 : i32
    %c0_i32_1 = arith.constant 0 : i32
    return %c0_i32, %c0_i32_0 : i32, i32
  }
  func.func @transform_5(%arg0: i32) -> (i32, i32) {
    %c0_i32 = arith.constant 0 : i32
    %c0_i32_0 = arith.constant 0 : i32
    return %arg0, %c0_i32 : i32, i32
  }
}

</mosaic_0001>

<llo_original>
// kernel: tpu_custom_call.1
$region0: #{tpu_custom_call.1}
  #allocation0 [shape = 'u32[]', space=smem, size = 0x4, offset = 0x4, fixed_abs, tag = 'smem constant byte address 0x4 - core index']
  #allocation1 [shape = 'u32[72,128]{1,0:T(1,128)}', space=vmem, size = 0x9000, scoped, tag = 'internal scratch']
  %s0 = inlined_call_operand.hbm [shape: f32[16,8,32], index: 0, kind: input, shape index: {}]
  %s1 = inlined_call_operand.hbm [shape: f32[32,32], index: 1, kind: input, shape index: {}]
  %s2 = inlined_call_operand.vmem [shape: f32[1,32], index: 2, kind: input, shape index: {}]
  %s3 = inlined_call_operand.hbm [shape: f32[32,32], index: 3, kind: input, shape index: {}]
  %s4 = inlined_call_operand.vmem [shape: f32[1,32], index: 4, kind: input, shape index: {}]
  %s5 = inlined_call_operand.hbm [shape: f32[16,32], index: 5, kind: output, shape index: {}]
  %s6 = sld [smem:[#allocation0]]
  $region65: #{tpu_custom_call.1} parent=0
    _
  %s8 = ssub.s32 1, %s6
  %s9 = scalar_select 0, %s8, %s6
  $region1: #{tpu_custom_call.1} parent=0
    #allocation2 [shape = 'u8[65536]{0}', space=vmem, size = 0x10000, scoped, tag = 'input window, operand 0']
    #allocation3 [shape = 's32[2]{0}', space=sflag, size = 0x8, scoped, tag = 'scoped memory for tpu_custom_call.1']
    #allocation4 [shape = 's32[2]{0}', space=sflag, size = 0x8, scoped, tag = 'scoped memory for tpu_custom_call.1']
    #allocation5 [shape = 'u8[16384]{0}', space=vmem, size = 0x4000, scoped, tag = 'input window, operand 1, single buffered']
    #allocation6 [shape = 's32[1]{0}', space=sflag, size = 0x4, scoped, tag = 'scoped memory for tpu_custom_call.1']
    #allocation7 [shape = 'u8[16384]{0}', space=vmem, size = 0x4000, scoped, tag = 'input window, operand 3, single buffered']
    #allocation8 [shape = 'u8[8192]{0}', space=vmem, size = 0x2000, scoped, tag = 'output window, operand 0']
    %10 = vsyncpa [#allocation3], 0
    %s11 = scalar_lea.sflag [#allocation3], 1
    %12 = vsyncpa %s11, 0
    %13 = vsyncpa [#allocation6], 0
    %14 = vsyncpa [#allocation4], 0
    %s15 = scalar_lea.sflag [#allocation4], 1
    %16 = vsyncpa %s15, 0
    loop: start=0, step=1, limit=4
    $region2: #{tpu_custom_call.1} parent=1 // loop_pre_header
      _
    $region3: #{tpu_custom_call.1} parent=1 // loop_header
      %s18 = sphi 0, %s22
      %p19 = scmp.ge.s32.totalorder %s18, 4
      %s28 = sphi 0, %s30
      %s31 = sphi 0, %s28
      %s32 = sphi 0, %s31
      %s48 = sphi 0, %s32
      %s52 = sphi 0, %s52
      %s54 = sphi 0, %s52
      %s55 = sphi 0, %s54
      %s69 = sphi 0, %s55
      %s73 = sphi 0, %s73
      %s75 = sphi 0, %s73
      %s76 = sphi 0, %s75
      %s90 = sphi 0, %s76
      %s94 = sphi 0, %s94
      %s96 = sphi 0, %s94
      %s97 = sphi 0, %s96
      %s111 = sphi 0, %s97
      %s115 = sphi 0, %s115
      %s117 = sphi 0, %s115
      %s118 = sphi 0, %s117
      %s132 = sphi 0, %s118
      %s138 = sphi 0, %s140
      %s141 = sphi 0, %s138
      %s142 = sphi 0, %s141
      %s158 = sphi 0, %s142
    $region4: #{tpu_custom_call.1} parent=1 // loop_header_branch
      %21 = sbr.rel (%p19) target = $region8
    $region5: #{tpu_custom_call.1} parent=1 // loop_body
      %s23 = ssub.s32 %s18, 1
      %s24 = ssub.s32 %s18, 2
      %s25 = sadd.s32 %s18, 1
      %s26 = ssub.s32 %s18, %s25
      %p27 = scmp.eq.s32.totalorder %s26, 0
      %s29 = sadd.s32 %s28, 1
      %s30 = scalar_select %p27, %s28, %s29
      %p33 = pneg %p27
      %p34 = scmp.eq.s32.totalorder %s18, 1
      %p35 = por %p33, %p34
      %p36 = scmp.ne.s32.totalorder %s28, %s31
      %p37 = scmp.eq.s32.totalorder %s18, 0
      %p38 = por %p36, %p37
      %p39 = scmp.ne.s32.totalorder %s28, %s31
      %p40 = scmp.eq.s32.totalorder %s23, 1
      %p41 = por %p39, %p40
      %p42 = scmp.ne.s32.totalorder %s31, %s32
      %p43 = scmp.eq.s32.totalorder %s23, 0
      %p44 = por %p42, %p43
      %p45 = scmp.ne.s32.totalorder %s31, %s32
      %p46 = scmp.eq.s32.totalorder %s24, 1
      %p47 = por %p45, %p46
      %p49 = scmp.ne.s32.totalorder %s32, %s48
      %p50 = scmp.eq.s32.totalorder %s24, 0
      %p51 = por %p49, %p50
      %s53 = sadd.s32 %s52, 1
      %p56 = scmp.eq.s32.totalorder %s18, 1
      %p57 = scmp.ne.s32.totalorder %s52, %s54
      %p58 = scmp.eq.s32.totalorder %s18, 0
      %p59 = por %p57, %p58
      %p60 = scmp.ne.s32.totalorder %s52, %s54
      %p61 = scmp.eq.s32.totalorder %s23, 1
      %p62 = por %p60, %p61
      %p63 = scmp.ne.s32.totalorder %s54, %s55
      %p64 = scmp.eq.s32.totalorder %s23, 0
      %p65 = por %p63, %p64
      %p66 = scmp.ne.s32.totalorder %s54, %s55
      %p67 = scmp.eq.s32.totalorder %s24, 1
      %p68 = por %p66, %p67
      %p70 = scmp.ne.s32.totalorder %s55, %s69
      %p71 = scmp.eq.s32.totalorder %s24, 0
      %p72 = por %p70, %p71
      %s74 = sadd.s32 %s73, 1
      %p77 = scmp.eq.s32.totalorder %s18, 1
      %p78 = scmp.ne.s32.totalorder %s73, %s75
      %p79 = scmp.eq.s32.totalorder %s18, 0
      %p80 = por %p78, %p79
      %p81 = scmp.ne.s32.totalorder %s73, %s75
      %p82 = scmp.eq.s32.totalorder %s23, 1
      %p83 = por %p81, %p82
      %p84 = scmp.ne.s32.totalorder %s75, %s76
      %p85 = scmp.eq.s32.totalorder %s23, 0
      %p86 = por %p84, %p85
      %p87 = scmp.ne.s32.totalorder %s75, %s76
      %p88 = scmp.eq.s32.totalorder %s24, 1
      %p89 = por %p87, %p88
      %p91 = scmp.ne.s32.totalorder %s76, %s90
      %p92 = scmp.eq.s32.totalorder %s24, 0
      %p93 = por %p91, %p92
      %s95 = sadd.s32 %s94, 1
      %p98 = scmp.eq.s32.totalorder %s18, 1
      %p99 = scmp.ne.s32.totalorder %s94, %s96
      %p100 = scmp.eq.s32.totalorder %s18, 0
      %p101 = por %p99, %p100
      %p102 = scmp.ne.s32.totalorder %s94, %s96
      %p103 = scmp.eq.s32.totalorder %s23, 1
      %p104 = por %p102, %p103
      %p105 = scmp.ne.s32.totalorder %s96, %s97
      %p106 = scmp.eq.s32.totalorder %s23, 0
      %p107 = por %p105, %p106
      %p108 = scmp.ne.s32.totalorder %s96, %s97
      %p109 = scmp.eq.s32.totalorder %s24, 1
      %p110 = por %p108, %p109
      %p112 = scmp.ne.s32.totalorder %s97, %s111
      %p113 = scmp.eq.s32.totalorder %s24, 0
      %p114 = por %p112, %p113
      %s116 = sadd.s32 %s115, 1
      %p119 = scmp.eq.s32.totalorder %s18, 1
      %p120 = scmp.ne.s32.totalorder %s115, %s117
      %p121 = scmp.eq.s32.totalorder %s18, 0
      %p122 = por %p120, %p121
      %p123 = scmp.ne.s32.totalorder %s115, %s117
      %p124 = scmp.eq.s32.totalorder %s23, 1
      %p125 = por %p123, %p124
      %p126 = scmp.ne.s32.totalorder %s117, %s118
      %p127 = scmp.eq.s32.totalorder %s23, 0
      %p128 = por %p126, %p127
      %p129 = scmp.ne.s32.totalorder %s117, %s118
      %p130 = scmp.eq.s32.totalorder %s24, 1
      %p131 = por %p129, %p130
      %p133 = scmp.ne.s32.totalorder %s118, %s132
      %p134 = scmp.eq.s32.totalorder %s24, 0
      %p135 = por %p133, %p134
      %s136 = ssub.s32 %s18, %s25
      %p137 = scmp.eq.s32.totalorder %s136, 0
      %s139 = sadd.s32 %s138, 1
      %s140 = scalar_select %p137, %s138, %s139
      %p143 = pneg %p137
      %p144 = scmp.eq.s32.totalorder %s18, 1
      %p145 = por %p143, %p144
      %p146 = scmp.ne.s32.totalorder %s138, %s141
      %p147 = scmp.eq.s32.totalorder %s18, 0
      %p148 = por %p146, %p147
      %p149 = scmp.ne.s32.totalorder %s138, %s141
      %p150 = scmp.eq.s32.totalorder %s23, 1
      %p151 = por %p149, %p150
      %p152 = scmp.ne.s32.totalorder %s141, %s142
      %p153 = scmp.eq.s32.totalorder %s23, 0
      %p154 = por %p152, %p153
      %p155 = scmp.ne.s32.totalorder %s141, %s142
      %p156 = scmp.eq.s32.totalorder %s24, 1
      %p157 = por %p155, %p156
      %p159 = scmp.ne.s32.totalorder %s142, %s158
      %p160 = scmp.eq.s32.totalorder %s24, 0
      %p161 = por %p159, %p160
      %p162 = scmp.le.s32.totalorder 1, %s18
      %p163 = scmp.lt.s32.totalorder %s18, 3
      %p164 = pnand %p162, %p163
      %p165 = pneg %p164
      // Predicated region
      $region9: #{tpu_custom_call.1} parent=5 // pred_check
        _
      $region10: #{tpu_custom_call.1} parent=5 // pred_check_branch
        %167 = sbr.rel (%p164) target = $region12
      $region11: #{tpu_custom_call.1} parent=5 // pred_region
        %s168 = ssub.s32 %s18, 1
        // Predicated region
        $region13: #{tpu_custom_call.1} parent=11 // pred_check
          %p169 = pneg %p65
        $region14: #{tpu_custom_call.1} parent=11 // pred_check_branch
          %171 = sbr.rel (%p169) target = $region16
        $region15: #{tpu_custom_call.1} parent=11 // pred_region
          %173 = vsyncadd [#allocation6], 0
          %s174 = sshll.u32 %s1, 4
          %s175 = int_to_ptr.hbm [resolvable:$true] %s174
          %s176 = sshll.u32 [#allocation5], 4
          %s177 = int_to_ptr.vmem [resolvable:$true] %s176
          %182 = dma.hbm_to_vmem [thread:$0]  %s175, 512, %s177, [#allocation6], 128, 128, 8
        $region16: #{tpu_custom_call.1} parent=11 // pred_fallthru
          _
        // Predicated region
        $region17: #{tpu_custom_call.1} parent=11 // pred_check
          %p183 = pneg %p86
        $region18: #{tpu_custom_call.1} parent=11 // pred_check_branch
          %185 = sbr.rel (%p183) target = $region20
        $region19: #{tpu_custom_call.1} parent=11 // pred_region
          _
        $region20: #{tpu_custom_call.1} parent=11 // pred_fallthru
          _
        // Predicated region
        $region21: #{tpu_custom_call.1} parent=11 // pred_check
          %p186 = pneg %p107
        $region22: #{tpu_custom_call.1} parent=11 // pred_check_branch
          %188 = sbr.rel (%p186) target = $region24
        $region23: #{tpu_custom_call.1} parent=11 // pred_region
          %190 = vsyncadd [#allocation6], 0
          %s191 = sshll.u32 %s3, 4
          %s192 = int_to_ptr.hbm [resolvable:$true] %s191
          %s193 = sshll.u32 [#allocation7], 4
          %s194 = int_to_ptr.vmem [resolvable:$true] %s193
          %199 = dma.hbm_to_vmem [thread:$0]  %s192, 512, %s194, [#allocation6], 128, 128, 8
        $region24: #{tpu_custom_call.1} parent=11 // pred_fallthru
          _
        // Predicated region
        $region25: #{tpu_custom_call.1} parent=11 // pred_check
          %p200 = pneg %p128
        $region26: #{tpu_custom_call.1} parent=11 // pred_check_branch
          %202 = sbr.rel (%p200) target = $region28
        $region27: #{tpu_custom_call.1} parent=11 // pred_region
          _
        $region28: #{tpu_custom_call.1} parent=11 // pred_fallthru
          _
      $region12: #{tpu_custom_call.1} parent=5 // pred_fallthru
        _
      %p203 = scmp.lt.s32.totalorder %s18, 2
      // Predicated region
      $region29: #{tpu_custom_call.1} parent=5 // pred_check
        %p204 = pneg %p203
      $region30: #{tpu_custom_call.1} parent=5 // pred_check_branch
        %206 = sbr.rel (%p204) target = $region32
      $region31: #{tpu_custom_call.1} parent=5 // pred_region
        // Predicated region
        $region33: #{tpu_custom_call.1} parent=31 // pred_check
          %p207 = pneg %p38
        $region34: #{tpu_custom_call.1} parent=31 // pred_check_branch
          %209 = sbr.rel (%p207) target = $region36
        $region35: #{tpu_custom_call.1} parent=31 // pred_region
          %s210 = sand.u32 %s28, 1
          %s211 = scalar_lea.sflag [#allocation3], %s210
          %s212 = sand.u32 %s28, 1
          %s213 = smul.addr %s212, 64
          %s214 = scalar_lea.vmem [#allocation2], %s213
          %s215 = smul.u32 8, %s18
          %217 = vsyncadd %s211, 0
          %s218 = smul.addr %s215, 8
          %s219 = scalar_lea.hbm %s0, %s218
          %s220 = sshll.u32 %s219, 4
          %s221 = int_to_ptr.hbm [resolvable:$true] %s220
          %s222 = sshll.u32 %s214, 4
          %s223 = int_to_ptr.vmem [resolvable:$true] %s222
          %228 = dma.hbm_to_vmem [thread:$0]  %s221, 1024, %s223, %s211, 128, 128, 8
        $region36: #{tpu_custom_call.1} parent=31 // pred_fallthru
          _
      $region32: #{tpu_custom_call.1} parent=5 // pred_fallthru
        _
      %p229 = scmp.le.s32.totalorder 1, %s18
      %p230 = scmp.lt.s32.totalorder %s18, 3
      %p231 = pnand %p229, %p230
      %p232 = pneg %p231
      // Predicated region
      $region37: #{tpu_custom_call.1} parent=5 // pred_check
        _
      $region38: #{tpu_custom_call.1} parent=5 // pred_check_branch
        %234 = sbr.rel (%p231) target = $region40
      $region39: #{tpu_custom_call.1} parent=5 // pred_region
        %s235 = ssub.s32 %s18, 1
        %s236 = sand.u32 %s31, 1
        %s237 = scalar_lea.sflag [#allocation3], %s236
        %s238 = sand.u32 %s31, 1
        %s239 = smul.addr %s238, 64
        %s240 = scalar_lea.vmem [#allocation2], %s239
        // Predicated region
        $region41: #{tpu_custom_call.1} parent=39 // pred_check
          %p241 = pneg %p44
        $region42: #{tpu_custom_call.1} parent=39 // pred_check_branch
          %243 = sbr.rel (%p241) target = $region44
        $region43: #{tpu_custom_call.1} parent=39 // pred_region
          %245 = dma.done %s237, 1024
        $region44: #{tpu_custom_call.1} parent=39 // pred_fallthru
          _
        // Predicated region
        $region45: #{tpu_custom_call.1} parent=39 // pred_check
          %p246 = pneg %p65
        $region46: #{tpu_custom_call.1} parent=39 // pred_check_branch
          %248 = sbr.rel (%p246) target = $region48
        $region47: #{tpu_custom_call.1} parent=39 // pred_region
          %250 = dma.done [#allocation6], 512
        $region48: #{tpu_custom_call.1} parent=39 // pred_fallthru
          _
        // Predicated region
        $region49: #{tpu_custom_call.1} parent=39 // pred_check
          %p251 = pneg %p107
        $region50: #{tpu_custom_call.1} parent=39 // pred_check_branch
          %253 = sbr.rel (%p251) target = $region52
        $region51: #{tpu_custom_call.1} parent=39 // pred_region
          %255 = dma.done [#allocation6], 512
        $region52: #{tpu_custom_call.1} parent=39 // pred_fallthru
          _
        %s256 = sand.u32 %s31, 1
        %s257 = scalar_lea.sflag [#allocation3], %s256
        %s258 = sand.u32 %s31, 1
        %s259 = smul.addr %s258, 64
        %s260 = scalar_lea.vmem [#allocation2], %s259
        %p261 = pneg %p44
        %p262 = pneg %p41
        %p263 = pneg %p65
        %p264 = pneg %p62
        %p265 = pneg %p86
        %p266 = pneg %p83
        %p267 = pneg %p107
        %p268 = pneg %p104
        %p269 = pneg %p128
        %p270 = pneg %p125
        %p271 = pneg %p154
        %p272 = pneg %p151
        %s273 = sand.u32 %s141, 1
        %s274 = scalar_lea.sflag [#allocation4], %s273
        %s275 = sand.u32 %s141, 1
        %s276 = smul.addr %s275, 8
        %s277 = scalar_lea.vmem [#allocation8], %s276
        %s278 = smul.u32 8, %s23
        %v279 = vld [vmem:[%s240] sm:$0xff]
        %v280 = vld [vmem:[%s240 + $0x8] sm:$0xff]
        %v281 = vld [vmem:[%s240 + $0x10] sm:$0xff]
        %v282 = vld [vmem:[%s240 + $0x18] sm:$0xff]
        %v283 = vld [vmem:[%s240 + $0x20] sm:$0xff]
        %v284 = vld [vmem:[%s240 + $0x28] sm:$0xff]
        %v285 = vld [vmem:[%s240 + $0x30] sm:$0xff]
        %v286 = vld [vmem:[%s240 + $0x38] sm:$0xff]
        %v287 = vld [vmem:[#allocation5] sm:$0xff]
        %v288 = vld [vmem:[#allocation5 + $0x8] sm:$0xff]
        %v289 = vld [vmem:[#allocation5 + $0x10] sm:$0xff]
        %v290 = vld [vmem:[#allocation5 + $0x18] sm:$0xff]
        %v291 = vld [vmem:[%s2] sm:$0x1]
        %v293 = vperm.slane %v291, 0
        %vm295 = vcmask 261120
        %v297 = vsel %vm295, %v279, 0
        %v300 = vsel %vm295, %v280, 0
        %v303 = vsel %vm295, %v281, 0
        %v306 = vsel %vm295, %v282, 0
        %v309 = vsel %vm295, %v283, 0
        %v312 = vsel %vm295, %v284, 0
        %v315 = vsel %vm295, %v285, 0
        %v318 = vsel %vm295, %v286, 0
        %320 = vmatpush.msra.mxu0 0.0
        %321 = vmatpush.msra.mxu0 0.0
        %322 = vmatpush.msra.mxu0 0.0
        %323 = vmatpush.msra.mxu0 0.0
        %324 = vmatpush.msra.mxu0 0.0
        %325 = vmatpush.msra.mxu0 0.0
        %326 = vmatpush.msra.mxu0 0.0
        %327 = vmatpush.msra.mxu0 0.0
        %328 = vmatpush.msra.mxu0 0.0
        %329 = vmatpush.msra.mxu0 0.0
        %330 = vmatpush.msra.mxu0 0.0
        %331 = vmatpush.msra.mxu0 0.0
        %332 = vmatpush.msra.mxu0 %v290
        %333 = vmatpush.msra.mxu0 %v289
        %334 = vmatpush.msra.mxu0 %v288
        %335 = vmatpush.msra.mxu0 %v287
        %336 = vmatmul.f32.gmra.mxu0 %v297
        %v337 = vpop.f32.mrf.mxu0
        %v338 = vadd.f32 %v293, %v337
        %339 = vmatmul.f32.gmra.mxu0 %v300
        %v340 = vpop.f32.mrf.mxu0
        %v341 = vadd.f32 %v293, %v340
        %342 = vmatmul.f32.gmra.mxu0 %v303
        %v343 = vpop.f32.mrf.mxu0
        %v344 = vadd.f32 %v293, %v343
        %345 = vmatmul.f32.gmra.mxu0 %v306
        %v346 = vpop.f32.mrf.mxu0
        %v347 = vadd.f32 %v293, %v346
        %348 = vmatmul.f32.gmra.mxu0 %v309
        %v349 = vpop.f32.mrf.mxu0
        %v350 = vadd.f32 %v293, %v349
        %351 = vmatmul.f32.gmra.mxu0 %v312
        %v352 = vpop.f32.mrf.mxu0
        %v353 = vadd.f32 %v293, %v352
        %354 = vmatmul.f32.gmra.mxu0 %v315
        %v355 = vpop.f32.mrf.mxu0
        %v356 = vadd.f32 %v293, %v355
        %357 = vmatmul.f32.gmra.mxu0 %v318
        %v358 = vpop.f32.mrf.mxu0
        %v359 = vadd.f32 %v293, %v358
        %360 = vdwg.mxu0
        %v361 = vsel %vm295, %v279, 0.0
        %v362 = vrot.slane %v361, 4
        %v363 = vadd.f32 %v361, %v362
        %v364 = vrot.slane %v363, 2
        %v365 = vadd.f32 %v363, %v364
        %v366 = vrot.slane %v365, 1
        %v367 = vadd.f32 %v365, %v366
        %v368 = vsel %vm295, %v280, 0.0
        %v369 = vrot.slane %v368, 4
        %v370 = vadd.f32 %v368, %v369
        %v371 = vrot.slane %v370, 2
        %v372 = vadd.f32 %v370, %v371
        %v373 = vrot.slane %v372, 1
        %v374 = vadd.f32 %v372, %v373
        %v375 = vsel %vm295, %v281, 0.0
        %v376 = vrot.slane %v375, 4
        %v377 = vadd.f32 %v375, %v376
        %v378 = vrot.slane %v377, 2
        %v379 = vadd.f32 %v377, %v378
        %v380 = vrot.slane %v379, 1
        %v381 = vadd.f32 %v379, %v380
        %v382 = vsel %vm295, %v282, 0.0
        %v383 = vrot.slane %v382, 4
        %v384 = vadd.f32 %v382, %v383
        %v385 = vrot.slane %v384, 2
        %v386 = vadd.f32 %v384, %v385
        %v387 = vrot.slane %v386, 1
        %v388 = vadd.f32 %v386, %v387
        %v389 = vsel %vm295, %v283, 0.0
        %v390 = vrot.slane %v389, 4
        %v391 = vadd.f32 %v389, %v390
        %v392 = vrot.slane %v391, 2
        %v393 = vadd.f32 %v391, %v392
        %v394 = vrot.slane %v393, 1
        %v395 = vadd.f32 %v393, %v394
        %v396 = vsel %vm295, %v284, 0.0
        %v397 = vrot.slane %v396, 4
        %v398 = vadd.f32 %v396, %v397
        %v399 = vrot.slane %v398, 2
        %v400 = vadd.f32 %v398, %v399
        %v401 = vrot.slane %v400, 1
        %v402 = vadd.f32 %v400, %v401
        %v403 = vsel %vm295, %v285, 0.0
        %v404 = vrot.slane %v403, 4
        %v405 = vadd.f32 %v403, %v404
        %v406 = vrot.slane %v405, 2
        %v407 = vadd.f32 %v405, %v406
        %v408 = vrot.slane %v407, 1
        %v409 = vadd.f32 %v407, %v408
        %v410 = vsel %vm295, %v286, 0.0
        %v411 = vrot.slane %v410, 4
        %v412 = vadd.f32 %v410, %v411
        %v413 = vrot.slane %v412, 2
        %v414 = vadd.f32 %v412, %v413
        %v415 = vrot.slane %v414, 1
        %v416 = vadd.f32 %v414, %v415
        %v417 = vrcp.pop 8.0
        %v418 = vmul.f32 8.0, %v417
        %v419 = vsub.f32 1.0, %v418
        %v420 = vmul.f32 %v417, %v419
        %v421 = vadd.f32 %v417, %v420
        %vm422 = vweird.f32 %v417
        %v423 = vsel %vm422, %v417, %v421
        %v424 = vmul.f32 %v367, %v423
        %v425 = vmul.f32 %v374, %v423
        %v426 = vmul.f32 %v381, %v423
        %v427 = vmul.f32 %v388, %v423
        %v428 = vmul.f32 %v395, %v423
        %v429 = vmul.f32 %v402, %v423
        %v430 = vmul.f32 %v409, %v423
        %v431 = vmul.f32 %v416, %v423
        %v432 = vld [vmem:[#allocation7] sm:$0xff]
        %v433 = vld [vmem:[#allocation7 + $0x8] sm:$0xff]
        %v434 = vld [vmem:[#allocation7 + $0x10] sm:$0xff]
        %v435 = vld [vmem:[#allocation7 + $0x18] sm:$0xff]
        %vm444 = vcmask 1041409
        %v445 = vsel %vm444, %v425, %v424
        %vm446 = vcmask 1042434
        %v447 = vsel %vm446, %v426, %v445
        %vm448 = vcmask 1043459
        %v449 = vsel %vm448, %v427, %v447
        %vm450 = vcmask 1044484
        %v451 = vsel %vm450, %v428, %v449
        %vm452 = vcmask 1045509
        %v453 = vsel %vm452, %v429, %v451
        %vm454 = vcmask 1046534
        %v455 = vsel %vm454, %v430, %v453
        %vm456 = vcmask 1047559
        %v457 = vsel %vm456, %v431, %v455
        %v458 = vsel %vm295, %v457, 0
        %460 = vmatpush.msra.mxu0 0.0
        %461 = vmatpush.msra.mxu0 0.0
        %462 = vmatpush.msra.mxu0 0.0
        %463 = vmatpush.msra.mxu0 0.0
        %464 = vmatpush.msra.mxu0 0.0
        %465 = vmatpush.msra.mxu0 0.0
        %466 = vmatpush.msra.mxu0 0.0
        %467 = vmatpush.msra.mxu0 0.0
        %468 = vmatpush.msra.mxu0 0.0
        %469 = vmatpush.msra.mxu0 0.0
        %470 = vmatpush.msra.mxu0 0.0
        %471 = vmatpush.msra.mxu0 0.0
        %472 = vmatpush.msra.mxu0 %v435
        %473 = vmatpush.msra.mxu0 %v434
        %474 = vmatpush.msra.mxu0 %v433
        %475 = vmatpush.msra.mxu0 %v432
        %476 = vmatmul.f32.gmra.mxu0 %v458
        %v477 = vpop.f32.mrf.mxu0
        %v478 = vadd.f32 0.0, %v477
        %479 = vdwg.mxu0
        %v481 = vrot.slane %v478, 1
        %v482 = vrot.slane %v478, 2
        %v483 = vrot.slane %v478, 3
        %v484 = vrot.slane %v478, 4
        %v485 = vrot.slane %v478, 5
        %v486 = vrot.slane %v478, 6
        %v487 = vrot.slane %v478, 7
        %v488 = vperm.slane %v478, 0
        %v489 = vperm.slane %v481, 0
        %v490 = vperm.slane %v482, 0
        %v491 = vperm.slane %v483, 0
        %v492 = vperm.slane %v484, 0
        %v493 = vperm.slane %v485, 0
        %v494 = vperm.slane %v486, 0
        %v495 = vperm.slane %v487, 0
        %v504 = vadd.f32 %v338, %v488
        %v505 = vadd.f32 %v341, %v489
        %v506 = vadd.f32 %v344, %v490
        %v507 = vadd.f32 %v347, %v491
        %v508 = vadd.f32 %v350, %v492
        %v509 = vadd.f32 %v353, %v493
        %v510 = vadd.f32 %v356, %v494
        %v511 = vadd.f32 %v359, %v495
        %v512 = vtanh.pop %v504
        %v513 = vtanh.pop %v505
        %v514 = vtanh.pop %v506
        %v515 = vtanh.pop %v507
        %v516 = vtanh.pop %v508
        %v517 = vtanh.pop %v509
        %v518 = vtanh.pop %v510
        %v519 = vtanh.pop %v511
        %v520 = vld [vmem:[%s4] sm:$0x1]
        %v522 = vperm.slane %v520, 0
        %v524 = vmul.f32 %v512, %v522
        %v525 = vmul.f32 %v513, %v522
        %v526 = vmul.f32 %v514, %v522
        %v527 = vmul.f32 %v515, %v522
        %v528 = vmul.f32 %v516, %v522
        %v529 = vmul.f32 %v517, %v522
        %v530 = vmul.f32 %v518, %v522
        %v531 = vmul.f32 %v519, %v522
        %v532 = vsel %vm295, %v524, 0.0
        %533 = vadd.xlane.f32.xlu0 %v532
        %v534 = vpop.xlane.xlu0 %533
        %v535 = vsel %vm295, %v525, 0.0
        %536 = vadd.xlane.f32.xlu0 %v535
        %v537 = vpop.xlane.xlu0 %536
        %v538 = vsel %vm295, %v526, 0.0
        %539 = vadd.xlane.f32.xlu0 %v538
        %v540 = vpop.xlane.xlu0 %539
        %v541 = vsel %vm295, %v527, 0.0
        %542 = vadd.xlane.f32.xlu0 %v541
        %v543 = vpop.xlane.xlu0 %542
        %v544 = vsel %vm295, %v528, 0.0
        %545 = vadd.xlane.f32.xlu0 %v544
        %v546 = vpop.xlane.xlu0 %545
        %v547 = vsel %vm295, %v529, 0.0
        %548 = vadd.xlane.f32.xlu0 %v547
        %v549 = vpop.xlane.xlu0 %548
        %v550 = vsel %vm295, %v530, 0.0
        %551 = vadd.xlane.f32.xlu0 %v550
        %v552 = vpop.xlane.xlu0 %551
        %v553 = vsel %vm295, %v531, 0.0
        %554 = vadd.xlane.f32.xlu0 %v553
        %v555 = vpop.xlane.xlu0 %554
        %v564 = vlaneseq
        %v565 = vand.u32 %v564, 127
        %v566 = vperm.slane %v534, %v565
        %v567 = vperm.slane %v537, %v565
        %v568 = vperm.slane %v540, %v565
        %v569 = vperm.slane %v543, %v565
        %v570 = vperm.slane %v546, %v565
        %v571 = vperm.slane %v549, %v565
        %v572 = vperm.slane %v552, %v565
        %v573 = vperm.slane %v555, %v565
        %v574 = vsel %vm444, %v567, %v566
        %v575 = vsel %vm446, %v568, %v574
        %v576 = vsel %vm448, %v569, %v575
        %v577 = vsel %vm450, %v570, %v576
        %v578 = vsel %vm452, %v571, %v577
        %v579 = vsel %vm454, %v572, %v578
        %v580 = vsel %vm456, %v573, %v579
        %vm582 = vcmask 64512
        %v583 = vsel %vm582, %v580, -inf
        %584 = vmax.xlane.f32.xlu0 %v583
        %v585 = vpop.xlane.xlu0 %584
        %v587 = vperm.slane %v585, 0
        %v588 = vperm.slane %v585, 1
        %v589 = vperm.slane %v585, 2
        %v590 = vperm.slane %v585, 3
        %v591 = vperm.slane %v585, 4
        %v592 = vperm.slane %v585, 5
        %v593 = vperm.slane %v585, 6
        %v594 = vperm.slane %v585, 7
        %v603 = vsub.f32 %v534, %v587
        %v604 = vsub.f32 %v537, %v588
        %v605 = vsub.f32 %v540, %v589
        %v606 = vsub.f32 %v543, %v590
        %v607 = vsub.f32 %v546, %v591
        %v608 = vsub.f32 %v549, %v592
        %v609 = vsub.f32 %v552, %v593
        %v610 = vsub.f32 %v555, %v594
        %v611 = vmul.f32 %v603, 1.442695
        %v612 = vpow.pop %v611
        %v613 = vmul.f32 %v604, 1.442695
        %v614 = vpow.pop %v613
        %v615 = vmul.f32 %v605, 1.442695
        %v616 = vpow.pop %v615
        %v617 = vmul.f32 %v606, 1.442695
        %v618 = vpow.pop %v617
        %v619 = vmul.f32 %v607, 1.442695
        %v620 = vpow.pop %v619
        %v621 = vmul.f32 %v608, 1.442695
        %v622 = vpow.pop %v621
        %v623 = vmul.f32 %v609, 1.442695
        %v624 = vpow.pop %v623
        %v625 = vmul.f32 %v610, 1.442695
        %v626 = vpow.pop %v625
        %635 = vset.pattern.permute.xlu0 0
        %636 = vperm.xlu0 %635, %v612
        %v637 = vpop.permute.xlu0 %636
        %638 = vset.pattern.permute.xlu0 0
        %639 = vperm.xlu0 %638, %v614
        %v640 = vpop.permute.xlu0 %639
        %641 = vset.pattern.permute.xlu0 0
        %642 = vperm.xlu0 %641, %v616
        %v643 = vpop.permute.xlu0 %642
        %644 = vset.pattern.permute.xlu0 0
        %645 = vperm.xlu0 %644, %v618
        %v646 = vpop.permute.xlu0 %645
        %647 = vset.pattern.permute.xlu0 0
        %648 = vperm.xlu0 %647, %v620
        %v649 = vpop.permute.xlu0 %648
        %650 = vset.pattern.permute.xlu0 0
        %651 = vperm.xlu0 %650, %v622
        %v652 = vpop.permute.xlu0 %651
        %653 = vset.pattern.permute.xlu0 0
        %654 = vperm.xlu0 %653, %v624
        %v655 = vpop.permute.xlu0 %654
        %656 = vset.pattern.permute.xlu0 0
        %657 = vperm.xlu0 %656, %v626
        %v658 = vpop.permute.xlu0 %657
        %v659 = vperm.slane %v637, %v565
        %v660 = vperm.slane %v640, %v565
        %v661 = vperm.slane %v643, %v565
        %v662 = vperm.slane %v646, %v565
        %v663 = vperm.slane %v649, %v565
        %v664 = vperm.slane %v652, %v565
        %v665 = vperm.slane %v655, %v565
        %v666 = vperm.slane %v658, %v565
        %v667 = vsel %vm444, %v660, %v659
        %v668 = vsel %vm446, %v661, %v667
        %v669 = vsel %vm448, %v662, %v668
        %v670 = vsel %vm450, %v663, %v669
        %v671 = vsel %vm452, %v664, %v670
        %v672 = vsel %vm454, %v665, %v671
        %v673 = vsel %vm456, %v666, %v672
        %v675 = vsel %vm582, %v673, 0.0
        %676 = vadd.xlane.f32.xlu0 %v675
        %v677 = vpop.xlane.xlu0 %676
        %v679 = vperm.slane %v677, 0
        %v680 = vperm.slane %v677, 1
        %v681 = vperm.slane %v677, 2
        %v682 = vperm.slane %v677, 3
        %v683 = vperm.slane %v677, 4
        %v684 = vperm.slane %v677, 5
        %v685 = vperm.slane %v677, 6
        %v686 = vperm.slane %v677, 7
        %v695 = vrcp.pop %v679
        %v696 = vmul.f32 %v679, %v695
        %v697 = vsub.f32 1.0, %v696
        %v698 = vmul.f32 %v695, %v697
        %v699 = vadd.f32 %v695, %v698
        %vm700 = vweird.f32 %v679
        %vm701 = vweird.f32 %v695
        %vm702 = vmor %vm700, %vm701
        %v703 = vsel %vm702, %v695, %v699
        %v704 = vand.u32 2147483647, %v679
        %vm705 = vcmp.eq.f32.partialorder %v704, 8.507059e+37
        %v706 = vand.u32 %v679, 2147483648
        %v707 = vor.u32 1.1754944e-38, %v706
        %v708 = vsel %vm705, %v707, %v703
        %v709 = vmul.f32 %v612, %v708
        %v710 = vrcp.pop %v680
        %v711 = vmul.f32 %v680, %v710
        %v712 = vsub.f32 1.0, %v711
        %v713 = vmul.f32 %v710, %v712
        %v714 = vadd.f32 %v710, %v713
        %vm715 = vweird.f32 %v680
        %vm716 = vweird.f32 %v710
        %vm717 = vmor %vm715, %vm716
        %v718 = vsel %vm717, %v710, %v714
        %v719 = vand.u32 2147483647, %v680
        %vm720 = vcmp.eq.f32.partialorder %v719, 8.507059e+37
        %v721 = vand.u32 %v680, 2147483648
        %v722 = vor.u32 1.1754944e-38, %v721
        %v723 = vsel %vm720, %v722, %v718
        %v724 = vmul.f32 %v614, %v723
        %v725 = vrcp.pop %v681
        %v726 = vmul.f32 %v681, %v725
        %v727 = vsub.f32 1.0, %v726
        %v728 = vmul.f32 %v725, %v727
        %v729 = vadd.f32 %v725, %v728
        %vm730 = vweird.f32 %v681
        %vm731 = vweird.f32 %v725
        %vm732 = vmor %vm730, %vm731
        %v733 = vsel %vm732, %v725, %v729
        %v734 = vand.u32 2147483647, %v681
        %vm735 = vcmp.eq.f32.partialorder %v734, 8.507059e+37
        %v736 = vand.u32 %v681, 2147483648
        %v737 = vor.u32 1.1754944e-38, %v736
        %v738 = vsel %vm735, %v737, %v733
        %v739 = vmul.f32 %v616, %v738
        %v740 = vrcp.pop %v682
        %v741 = vmul.f32 %v682, %v740
        %v742 = vsub.f32 1.0, %v741
        %v743 = vmul.f32 %v740, %v742
        %v744 = vadd.f32 %v740, %v743
        %vm745 = vweird.f32 %v682
        %vm746 = vweird.f32 %v740
        %vm747 = vmor %vm745, %vm746
        %v748 = vsel %vm747, %v740, %v744
        %v749 = vand.u32 2147483647, %v682
        %vm750 = vcmp.eq.f32.partialorder %v749, 8.507059e+37
        %v751 = vand.u32 %v682, 2147483648
        %v752 = vor.u32 1.1754944e-38, %v751
        %v753 = vsel %vm750, %v752, %v748
        %v754 = vmul.f32 %v618, %v753
        %v755 = vrcp.pop %v683
        %v756 = vmul.f32 %v683, %v755
        %v757 = vsub.f32 1.0, %v756
        %v758 = vmul.f32 %v755, %v757
        %v759 = vadd.f32 %v755, %v758
        %vm760 = vweird.f32 %v683
        %vm761 = vweird.f32 %v755
        %vm762 = vmor %vm760, %vm761
        %v763 = vsel %vm762, %v755, %v759
        %v764 = vand.u32 2147483647, %v683
        %vm765 = vcmp.eq.f32.partialorder %v764, 8.507059e+37
        %v766 = vand.u32 %v683, 2147483648
        %v767 = vor.u32 1.1754944e-38, %v766
        %v768 = vsel %vm765, %v767, %v763
        %v769 = vmul.f32 %v620, %v768
        %v770 = vrcp.pop %v684
        %v771 = vmul.f32 %v684, %v770
        %v772 = vsub.f32 1.0, %v771
        %v773 = vmul.f32 %v770, %v772
        %v774 = vadd.f32 %v770, %v773
        %vm775 = vweird.f32 %v684
        %vm776 = vweird.f32 %v770
        %vm777 = vmor %vm775, %vm776
        %v778 = vsel %vm777, %v770, %v774
        %v779 = vand.u32 2147483647, %v684
        %vm780 = vcmp.eq.f32.partialorder %v779, 8.507059e+37
        %v781 = vand.u32 %v684, 2147483648
        %v782 = vor.u32 1.1754944e-38, %v781
        %v783 = vsel %vm780, %v782, %v778
        %v784 = vmul.f32 %v622, %v783
        %v785 = vrcp.pop %v685
        %v786 = vmul.f32 %v685, %v785
        %v787 = vsub.f32 1.0, %v786
        %v788 = vmul.f32 %v785, %v787
        %v789 = vadd.f32 %v785, %v788
        %vm790 = vweird.f32 %v685
        %vm791 = vweird.f32 %v785
        %vm792 = vmor %vm790, %vm791
        %v793 = vsel %vm792, %v785, %v789
        %v794 = vand.u32 2147483647, %v685
        %vm795 = vcmp.eq.f32.partialorder %v794, 8.507059e+37
        %v796 = vand.u32 %v685, 2147483648
        %v797 = vor.u32 1.1754944e-38, %v796
        %v798 = vsel %vm795, %v797, %v793
        %v799 = vmul.f32 %v624, %v798
        %v800 = vrcp.pop %v686
        %v801 = vmul.f32 %v686, %v800
        %v802 = vsub.f32 1.0, %v801
        %v803 = vmul.f32 %v800, %v802
        %v804 = vadd.f32 %v800, %v803
        %vm805 = vweird.f32 %v686
        %vm806 = vweird.f32 %v800
        %vm807 = vmor %vm805, %vm806
        %v808 = vsel %vm807, %v800, %v804
        %v809 = vand.u32 2147483647, %v686
        %vm810 = vcmp.eq.f32.partialorder %v809, 8.507059e+37
        %v811 = vand.u32 %v686, 2147483648
        %v812 = vor.u32 1.1754944e-38, %v811
        %v813 = vsel %vm810, %v812, %v808
        %v814 = vmul.f32 %v626, %v813
        %816 = vset.pattern.permute.xlu0 0
        %817 = vperm.xlu0 %816, %v709
        %v818 = vpop.permute.xlu0 %817
        %821 = vset.pattern.permute.xlu0 0
        %822 = vperm.xlu0 %821, %v724
        %v823 = vpop.permute.xlu0 %822
        %826 = vset.pattern.permute.xlu0 0
        %827 = vperm.xlu0 %826, %v739
        %v828 = vpop.permute.xlu0 %827
        %831 = vset.pattern.permute.xlu0 0
        %832 = vperm.xlu0 %831, %v754
        %v833 = vpop.permute.xlu0 %832
        %836 = vset.pattern.permute.xlu0 0
        %837 = vperm.xlu0 %836, %v769
        %v838 = vpop.permute.xlu0 %837
        %841 = vset.pattern.permute.xlu0 0
        %842 = vperm.xlu0 %841, %v784
        %v843 = vpop.permute.xlu0 %842
        %846 = vset.pattern.permute.xlu0 0
        %847 = vperm.xlu0 %846, %v799
        %v848 = vpop.permute.xlu0 %847
        %851 = vset.pattern.permute.xlu0 0
        %852 = vperm.xlu0 %851, %v814
        %v853 = vpop.permute.xlu0 %852
        %v855 = vmul.f32 %v818, %v279
        %v856 = vmul.f32 %v823, %v280
        %v857 = vmul.f32 %v828, %v281
        %v858 = vmul.f32 %v833, %v282
        %v859 = vmul.f32 %v838, %v283
        %v860 = vmul.f32 %v843, %v284
        %v861 = vmul.f32 %v848, %v285
        %v862 = vmul.f32 %v853, %v286
        %v863 = vsel %vm295, %v855, 0.0
        %v864 = vrot.slane %v863, 4
        %v865 = vadd.f32 %v863, %v864
        %v866 = vrot.slane %v865, 2
        %v867 = vadd.f32 %v865, %v866
        %v868 = vrot.slane %v867, 1
        %v869 = vadd.f32 %v867, %v868
        %v870 = vsel %vm295, %v856, 0.0
        %v871 = vrot.slane %v870, 4
        %v872 = vadd.f32 %v870, %v871
        %v873 = vrot.slane %v872, 2
        %v874 = vadd.f32 %v872, %v873
        %v875 = vrot.slane %v874, 1
        %v876 = vadd.f32 %v874, %v875
        %v877 = vsel %vm295, %v857, 0.0
        %v878 = vrot.slane %v877, 4
        %v879 = vadd.f32 %v877, %v878
        %v880 = vrot.slane %v879, 2
        %v881 = vadd.f32 %v879, %v880
        %v882 = vrot.slane %v881, 1
        %v883 = vadd.f32 %v881, %v882
        %v884 = vsel %vm295, %v858, 0.0
        %v885 = vrot.slane %v884, 4
        %v886 = vadd.f32 %v884, %v885
        %v887 = vrot.slane %v886, 2
        %v888 = vadd.f32 %v886, %v887
        %v889 = vrot.slane %v888, 1
        %v890 = vadd.f32 %v888, %v889
        %v891 = vsel %vm295, %v859, 0.0
        %v892 = vrot.slane %v891, 4
        %v893 = vadd.f32 %v891, %v892
        %v894 = vrot.slane %v893, 2
        %v895 = vadd.f32 %v893, %v894
        %v896 = vrot.slane %v895, 1
        %v897 = vadd.f32 %v895, %v896
        %v898 = vsel %vm295, %v860, 0.0
        %v899 = vrot.slane %v898, 4
        %v900 = vadd.f32 %v898, %v899
        %v901 = vrot.slane %v900, 2
        %v902 = vadd.f32 %v900, %v901
        %v903 = vrot.slane %v902, 1
        %v904 = vadd.f32 %v902, %v903
        %v905 = vsel %vm295, %v861, 0.0
        %v906 = vrot.slane %v905, 4
        %v907 = vadd.f32 %v905, %v906
        %v908 = vrot.slane %v907, 2
        %v909 = vadd.f32 %v907, %v908
        %v910 = vrot.slane %v909, 1
        %v911 = vadd.f32 %v909, %v910
        %v912 = vsel %vm295, %v862, 0.0
        %v913 = vrot.slane %v912, 4
        %v914 = vadd.f32 %v912, %v913
        %v915 = vrot.slane %v914, 2
        %v916 = vadd.f32 %v914, %v915
        %v917 = vrot.slane %v916, 1
        %v918 = vadd.f32 %v916, %v917
        %v927 = vsel %vm444, %v876, %v869
        %v928 = vsel %vm446, %v883, %v927
        %v929 = vsel %vm448, %v890, %v928
        %v930 = vsel %vm450, %v897, %v929
        %v931 = vsel %vm452, %v904, %v930
        %v932 = vsel %vm454, %v911, %v931
        %v933 = vsel %vm456, %v918, %v932
        %935 = vst.msk [vmem:[%s277] sm:$0xff] %vm295, %v933
        %s936 = sand.u32 %s141, 1
        %s937 = scalar_lea.sflag [#allocation4], %s936
        %s938 = sand.u32 %s141, 1
        %s939 = smul.addr %s938, 8
        %s940 = scalar_lea.vmem [#allocation8], %s939
        // Predicated region
        $region53: #{tpu_custom_call.1} parent=39 // pred_check
          %p941 = pneg %p151
        $region54: #{tpu_custom_call.1} parent=39 // pred_check_branch
          %943 = sbr.rel (%p941) target = $region56
        $region55: #{tpu_custom_call.1} parent=39 // pred_region
          %945 = vsyncadd %s937, 0
          %s946 = smul.addr %s23, 8
          %s947 = scalar_lea.hbm %s5, %s946
          %s949 = sshll.u32 %s940, 4
          %s950 = int_to_ptr.vmem [resolvable:$true] %s949
          %s951 = sshll.u32 %s947, 4
          %s952 = int_to_ptr.hbm [resolvable:$true] %s951
          %954 = dma.vmem_to_hbm [thread:$0]  %s950, 128, %s952, %s937
        $region56: #{tpu_custom_call.1} parent=39 // pred_fallthru
          _
      $region40: #{tpu_custom_call.1} parent=5 // pred_fallthru
        _
      %p955 = scmp.le.s32.totalorder 2, %s18
      // Predicated region
      $region57: #{tpu_custom_call.1} parent=5 // pred_check
        %p956 = pneg %p955
      $region58: #{tpu_custom_call.1} parent=5 // pred_check_branch
        %958 = sbr.rel (%p956) target = $region60
      $region59: #{tpu_custom_call.1} parent=5 // pred_region
        %s959 = ssub.s32 %s18, 2
        // Predicated region
        $region61: #{tpu_custom_call.1} parent=59 // pred_check
          %p960 = pneg %p157
        $region62: #{tpu_custom_call.1} parent=59 // pred_check_branch
          %962 = sbr.rel (%p960) target = $region64
        $region63: #{tpu_custom_call.1} parent=59 // pred_region
          %s963 = sand.u32 %s142, 1
          %s964 = scalar_lea.sflag [#allocation4], %s963
          %s965 = sand.u32 %s142, 1
          %s966 = smul.addr %s965, 8
          %s967 = scalar_lea.vmem [#allocation8], %s966
          %969 = dma.done %s964, 128
        $region64: #{tpu_custom_call.1} parent=59 // pred_fallthru
          _
      $region60: #{tpu_custom_call.1} parent=5 // pred_fallthru
        _
    $region6: #{tpu_custom_call.1} parent=1 // loop_footer
      %s22 = sadd.s32 1, %s18
    $region7: #{tpu_custom_call.1} parent=1 // loop_footer_branch
      %17 = sbr.rel target = $region3
    $region8: #{tpu_custom_call.1} parent=1 // loop_exit
      _
    %970 = vsyncpa [#allocation3], 1
    %s971 = scalar_lea.sflag [#allocation3], 1
    %972 = vsyncpa %s971, 1
    %973 = vsyncpa [#allocation6], 1
    %974 = vsyncpa [#allocation4], 1
    %s975 = scalar_lea.sflag [#allocation4], 1
    %976 = vsyncpa %s975, 1

</llo_original>
